<compile_context>
chip_gen: v7x
topology: tpu7x:2x2x1
jax: 0.10.0
libtpu: 0.0.40
codegen_flags: <defaults>
</compile_context>

<pallas_src>
import functools
import math

import jax
import jax.numpy as jnp
from jax.experimental import pallas as pl
from jax.experimental.pallas import tpu as pltpu


# ----------------------------------------------------------------------------
# helpers used inside kernels
# ----------------------------------------------------------------------------
def _layernorm(x, w_row, b_row, eps):
    mu = jnp.mean(x, axis=-1, keepdims=True)
    var = jnp.mean((x - mu) ** 2, axis=-1, keepdims=True)
    return (x - mu) * jax.lax.rsqrt(var + eps) * w_row + b_row


def _gelu_tanh(x):
    # tanh-form GELU (== jax.nn.gelu(approximate=True)); routes the
    # transcendental onto the EUP instead of a long VALU erf polynomial.
    c = math.sqrt(2.0 / math.pi)
    return 0.5 * x * (1.0 + jnp.tanh(c * (x + 0.044715 * x * x * x)))


def _seq_tile(s, target=256):
    for t in (target, 128, 64, 32, 16, 8):
        if s % t == 0:
            return t
    return s


def _cparams(semantics):
    return pltpu.CompilerParams(dimension_semantics=semantics,
                                vmem_limit_bytes=64 * 1024 * 1024)


# ----------------------------------------------------------------------------
# per-block kernels
# ----------------------------------------------------------------------------
def qkv_proj_kernel(x_ref, ln_w, ln_b, wqkv_ref, bqkv_ref, qkv_ref, *, eps):
    x = x_ref[0]                                           # (ts, H) f32
    h = _layernorm(x, ln_w[0], ln_b[0], eps)
    acc = jnp.dot(h.astype(jnp.bfloat16), wqkv_ref[...],
                  preferred_element_type=jnp.float32) + bqkv_ref[0]
    qkv_ref[0] = acc.astype(jnp.bfloat16)


def attention_kernel(x_ref, qrows_ref, kv_ref, wout_ref, bout_ref, o_ref,
                     *, num_heads, head_size):
    H = num_heads * head_size
    x = x_ref[0]                                           # (tq, H) f32 residual
    tq = x.shape[0]
    kv = kv_ref[0]                                         # (S, 3H) bf16, full seq
    S = kv.shape[0]

    # head-batched layout (nh, rows, hd) -- one batched contraction per step,
    # no per-head Python unroll, no explicit K transpose.
    q = qrows_ref[0][:, :H].reshape(tq, num_heads, head_size)
    k = kv[:, H:2 * H].reshape(S, num_heads, head_size)
    v = kv[:, 2 * H:].reshape(S, num_heads, head_size)
    qb = jnp.swapaxes(q, 0, 1)                             # (nh, tq, hd) bf16
    kb = jnp.swapaxes(k, 0, 1)                             # (nh, S,  hd) bf16
    vb = jnp.swapaxes(v, 0, 1)                             # (nh, S,  hd) bf16

    scores = jnp.einsum('hqd,hkd->hqk', qb, kb,
                        preferred_element_type=jnp.float32)
    scores = scores * jnp.float32(1.0 / math.sqrt(head_size))

    r0 = pl.program_id(1) * tq                             # global row offset
    q_idx = r0 + jax.lax.broadcasted_iota(jnp.int32, (tq, S), 0)
    k_idx = jax.lax.broadcasted_iota(jnp.int32, (tq, S), 1)
    mask = q_idx < k_idx                                   # future keys
    scores = jnp.where(mask[None, :, :], jnp.float32(-10000.0), scores)

    m = jnp.max(scores, axis=-1, keepdims=True)
    e = jnp.exp(scores - m)
    denom = jnp.sum(e, axis=-1, keepdims=True)
    probs = e * pl.reciprocal(denom, approx=True)          # EUP

    ctx = jnp.einsum('hqk,hkd->hqd', probs.astype(jnp.bfloat16), vb,
                     preferred_element_type=jnp.float32)   # (nh, tq, hd) f32
    ctx = jnp.swapaxes(ctx, 0, 1).reshape(tq, H)

    attn = jnp.dot(ctx.astype(jnp.bfloat16), wout_ref[...],
                   preferred_element_type=jnp.float32) + bout_ref[0]
    o_ref[0] = x + attn


def mlp_kernel(x_ref, ln_w, ln_b, w1_ref, b1_ref, w2_ref, b2_ref, o_ref, *, eps):
    x = x_ref[0]                                           # (ts, H) f32
    h = _layernorm(x, ln_w[0], ln_b[0], eps)
    m = jnp.dot(h.astype(jnp.bfloat16), w1_ref[...],
                preferred_element_type=jnp.float32) + b1_ref[0]
    m = _gelu_tanh(m)
    y = jnp.dot(m.astype(jnp.bfloat16), w2_ref[...],
                preferred_element_type=jnp.float32) + b2_ref[0]
    o_ref[0] = x + y                                       # dropout = identity (eval)


def gpt2_block(x, p, *, num_heads, eps):
    B, S, H = x.shape
    head_size = H // num_heads
    ts = _seq_tile(S)
    n_t = S // ts

    def rep(shape):
        nd = len(shape)
        return pl.BlockSpec(shape, lambda b, i, _nd=nd: (0,) * _nd)

    # (1) LN1 + QKV projection -> (B, S, 3H) bf16
    qkv = pl.pallas_call(
        functools.partial(qkv_proj_kernel, eps=eps),
        out_shape=jax.ShapeDtypeStruct((B, S, 3 * H), jnp.bfloat16),
        grid=(B, n_t),
        in_specs=[pl.BlockSpec((1, ts, H), lambda b, i: (b, i, 0)),
                  rep(p["ln1_w"].shape), rep(p["ln1_b"].shape),
                  rep(p["wqkv"].shape), rep(p["bqkv"].shape)],
        out_specs=pl.BlockSpec((1, ts, 3 * H), lambda b, i: (b, i, 0)),
        compiler_params=_cparams(("parallel", "parallel")),
    )(x, p["ln1_w"], p["ln1_b"], p["wqkv"], p["bqkv"])

    # (2) causal attention (q-tiled, full KV) + output projection + residual
    attn_res = pl.pallas_call(
        functools.partial(attention_kernel,
                          num_heads=num_heads, head_size=head_size),
        out_shape=jax.ShapeDtypeStruct((B, S, H), jnp.float32),
        grid=(B, n_t),
        in_specs=[pl.BlockSpec((1, ts, H), lambda b, i: (b, i, 0)),       # residual
                  pl.BlockSpec((1, ts, 3 * H), lambda b, i: (b, i, 0)),   # q rows
                  pl.BlockSpec((1, S, 3 * H), lambda b, i: (b, 0, 0)),    # full K/V
                  rep(p["wout"].shape), rep(p["bout"].shape)],
        out_specs=pl.BlockSpec((1, ts, H), lambda b, i: (b, i, 0)),
        compiler_params=_cparams(("parallel", "parallel")),
    )(x, qkv, qkv, p["wout"], p["bout"])

    # (3) LN2 + GELU MLP + residual
    out = pl.pallas_call(
        functools.partial(mlp_kernel, eps=eps),
        out_shape=jax.ShapeDtypeStruct((B, S, H), jnp.float32),
        grid=(B, n_t),
        in_specs=[pl.BlockSpec((1, ts, H), lambda b, i: (b, i, 0)),
                  rep(p["ln2_w"].shape), rep(p["ln2_b"].shape),
                  rep(p["w1"].shape), rep(p["b1"].shape),
                  rep(p["w2"].shape), rep(p["b2"].shape)],
        out_specs=pl.BlockSpec((1, ts, H), lambda b, i: (b, i, 0)),
        compiler_params=_cparams(("parallel", "parallel")),
    )(attn_res, p["ln2_w"], p["ln2_b"], p["w1"], p["b1"], p["w2"], p["b2"])
    return out


# ----------------------------------------------------------------------------
# final LayerNorm (last token only) + vocab-tiled logits
# ----------------------------------------------------------------------------
def final_ln_kernel(x_ref, ln_w, ln_b, o_ref, *, eps):
    o_ref[...] = _layernorm(x_ref[...], ln_w[0], ln_b[0], eps)


def logits_kernel(enc_ref, wte_ref, o_ref):
    h = enc_ref[...].astype(jnp.bfloat16)                  # (B, H)
    w = wte_ref[...]                                       # (TV, H) bf16
    # contract over H directly (no wte transpose materialized anywhere)
    o_ref[...] = jax.lax.dot_general(h, w, (((1,), (1,)), ((), ())),
                                     preferred_element_type=jnp.float32)


def gpt2_final_ln(x_last, lnw, lnb, *, eps):
    B, H = x_last.shape
    return pl.pallas_call(
        functools.partial(final_ln_kernel, eps=eps),
        out_shape=jax.ShapeDtypeStruct((B, H), jnp.float32),
        grid=(1,),
        in_specs=[pl.BlockSpec((B, H), lambda i: (0, 0)),
                  pl.BlockSpec((1, H), lambda i: (0, 0)),
                  pl.BlockSpec((1, H), lambda i: (0, 0))],
        out_specs=pl.BlockSpec((B, H), lambda i: (0, 0)),
        compiler_params=_cparams(("arbitrary",)),
    )(x_last, lnw, lnb)


def gpt2_logits(enc_ln, wte_logits, *, tv):
    B, H = enc_ln.shape
    v_pad = wte_logits.shape[0]
    return pl.pallas_call(
        logits_kernel,
        out_shape=jax.ShapeDtypeStruct((B, v_pad), jnp.float32),
        grid=(v_pad // tv,),
        in_specs=[pl.BlockSpec((B, H), lambda v: (0, 0)),
                  pl.BlockSpec((tv, H), lambda v: (v, 0))],
        out_specs=pl.BlockSpec((B, tv), lambda v: (0, v)),
        compiler_params=_cparams(("parallel",)),
    )(enc_ln, wte_logits)


# ----------------------------------------------------------------------------
# parameter init (deterministic; matmul weights stored transposed + bf16)
# ----------------------------------------------------------------------------
def init_params(key, num_layers, num_heads, vocab_size, hidden_size, max_pos,
                *, logit_vocab_tile=2048):
    keys = jax.random.split(key, 2 + num_layers)
    H = hidden_size
    wte = 0.02 * jax.random.normal(keys[0], (vocab_size, H), jnp.float32)
    wpe = 0.02 * jax.random.normal(keys[1], (max_pos, H), jnp.float32)

    # one-time bf16, 128-padded copy of wte for the (last-token) logits matmul
    v128 = ((vocab_size + 127) // 128) * 128
    tv = min(logit_vocab_tile, v128)
    v_pad = ((v128 + tv - 1) // tv) * tv
    wte_logits = jnp.zeros((v_pad, H), jnp.bfloat16).at[:vocab_size].set(
        wte.astype(jnp.bfloat16))

    params = {
        "wte": wte, "wpe": wpe,
        "wte_logits": wte_logits, "vocab_tile": tv, "vocab_size": vocab_size,
        "lnf_w": jnp.ones((1, H), jnp.float32),
        "lnf_b": jnp.zeros((1, H), jnp.float32),
        "blocks": [],
    }

    def linear(k, fan_in, fan_out):
        kw, kb = jax.random.split(k)
        bound = 1.0 / math.sqrt(fan_in)
        w = jax.random.uniform(kw, (fan_in, fan_out), jnp.float32, -bound, bound)
        b = jax.random.uniform(kb, (1, fan_out), jnp.float32, -bound, bound)
        return w.astype(jnp.bfloat16), b     # bf16 weights, f32 biases

    for i in range(num_layers):
        k = jax.random.split(keys[2 + i], 4)
        wqkv, bqkv = linear(k[0], H, 3 * H)
        wout, bout = linear(k[1], H, H)
        w1, b1 = linear(k[2], H, 4 * H)
        w2, b2 = linear(k[3], 4 * H, H)
        params["blocks"].append(dict(
            ln1_w=jnp.ones((1, H), jnp.float32), ln1_b=jnp.zeros((1, H), jnp.float32),
            wqkv=wqkv, bqkv=bqkv, wout=wout, bout=bout,
            ln2_w=jnp.ones((1, H), jnp.float32), ln2_b=jnp.zeros((1, H), jnp.float32),
            w1=w1, b1=b1, w2=w2, b2=b2))
    return params


# ----------------------------------------------------------------------------
# full forward (matches GPT2.forward, use_cache=False, eval-mode dropout)
# ----------------------------------------------------------------------------
def gpt2_forward(params, input_ids, *, num_heads, eps=1e-5):
    B, S = input_ids.shape
    # token + position embeddings (gather = plain-JAX glue); dropout = identity
    enc = params["wte"][input_ids] + params["wpe"][jnp.arange(S)][None, :, :]
    for blk in params["blocks"]:
        enc = gpt2_block(enc, blk, num_heads=num_heads, eps=eps)

    # GPT2Output only uses the last position of both outputs -> compute only it.
    x_last = enc[:, -1, :]                                   # (B, H)
    enc_ln = gpt2_final_ln(x_last, params["lnf_w"], params["lnf_b"], eps=eps)
    logits_pad = gpt2_logits(enc_ln, params["wte_logits"], tv=params["vocab_tile"])
    logits = logits_pad[:, :params["vocab_size"]]
    return logits, enc_ln


if __name__ == "__main__":
    num_layers = 2
    num_heads = 4
    vocab_size = 64
    hidden_size = 32
    max_position_embeddings = 16
    batch, seq_len = 2, 8

    key = jax.random.PRNGKey(0)
    pkey, ikey = jax.random.split(key)
    params = init_params(pkey, num_layers, num_heads, vocab_size,
                         hidden_size, max_position_embeddings)
    input_ids = jax.random.randint(ikey, (batch, seq_len), 0, vocab_size,
                                   dtype=jnp.int32)

    logits_last, final_enc_last = gpt2_forward(params, input_ids,
                                               num_heads=num_heads, eps=1e-5)
    jax.block_until_ready((logits_last, final_enc_last))

    assert logits_last.shape == (batch, vocab_size)
    assert final_enc_last.shape == (batch, hidden_size)
    assert bool(jnp.all(jnp.isfinite(logits_last)))
    assert bool(jnp.all(jnp.isfinite(final_enc_last)))
    print("KERNEL_OK")
</pallas_src>

<mosaic_0001>
module attributes {stable_mosaic.version = 11 : i64} {
  func.func @qkv_proj_kernel(%arg0: i32, %arg1: i32, %arg2: memref<1x8x32xf32, #tpu.memory_space<vmem>>, %arg3: memref<1x32xf32, #tpu.memory_space<vmem>>, %arg4: memref<1x32xf32, #tpu.memory_space<vmem>>, %arg5: memref<32x96xbf16, #tpu.memory_space<vmem>>, %arg6: memref<1x96xf32, #tpu.memory_space<vmem>>, %arg7: memref<1x8x96xbf16, #tpu.memory_space<vmem>>) attributes {dimension_semantics = [#tpu.dimension_semantics<parallel>, #tpu.dimension_semantics<parallel>], iteration_bounds = array<i64: 2, 1>, scalar_prefetch = 0 : i64, scratch_operands = 0 : i64, tpu.core_type = #tpu.core_type<tc>, window_params = [{transform_indices = @transform_0, window_bounds = array<i64: 1, 8, 32>}, {pipeline_mode = #tpu.pipeline_mode<synchronous>, transform_indices = @transform_1, window_bounds = array<i64: 1, 32>}, {pipeline_mode = #tpu.pipeline_mode<synchronous>, transform_indices = @transform_2, window_bounds = array<i64: 1, 32>}, {pipeline_mode = #tpu.pipeline_mode<synchronous>, transform_indices = @transform_3, window_bounds = array<i64: 32, 96>}, {pipeline_mode = #tpu.pipeline_mode<synchronous>, transform_indices = @transform_4, window_bounds = array<i64: 1, 96>}, {transform_indices = @transform_5, window_bounds = array<i64: 1, 8, 96>}]} {
    %c0 = arith.constant 0 : index
    %c0_0 = arith.constant 0 : index
    %c0_1 = arith.constant 0 : index
    %0 = vector.load %arg2[%c0, %c0_0, %c0_1] : memref<1x8x32xf32, #tpu.memory_space<vmem>>, vector<1x8x32xf32>
    %1 = vector.shape_cast %0 : vector<1x8x32xf32> to vector<8x32xf32>
    %c0_2 = arith.constant 0 : index
    %c0_3 = arith.constant 0 : index
    %2 = vector.load %arg3[%c0_2, %c0_3] : memref<1x32xf32, #tpu.memory_space<vmem>>, vector<1x32xf32>
    %3 = vector.shape_cast %2 : vector<1x32xf32> to vector<32xf32>
    %c0_4 = arith.constant 0 : index
    %c0_5 = arith.constant 0 : index
    %4 = vector.load %arg4[%c0_4, %c0_5] : memref<1x32xf32, #tpu.memory_space<vmem>>, vector<1x32xf32>
    %5 = vector.shape_cast %4 : vector<1x32xf32> to vector<32xf32>
    %cst = arith.constant dense<0.000000e+00> : vector<8xf32>
    %6 = vector.multi_reduction <add>, %1, %cst [1] : vector<8x32xf32> to vector<8xf32>
    %7 = vector.shape_cast %6 : vector<8xf32> to vector<8x1xf32>
    %cst_6 = arith.constant 3.200000e+01 : f32
    %8 = vector.broadcast %cst_6 : f32 to vector<8x1xf32>
    %9 = arith.divf %7, %8 : vector<8x1xf32>
    %10 = vector.broadcast %9 : vector<8x1xf32> to vector<8x32xf32>
    %11 = arith.subf %1, %10 : vector<8x32xf32>
    %12 = arith.mulf %11, %11 : vector<8x32xf32>
    %cst_7 = arith.constant dense<0.000000e+00> : vector<8xf32>
    %13 = vector.multi_reduction <add>, %12, %cst_7 [1] : vector<8x32xf32> to vector<8xf32>
    %14 = vector.shape_cast %13 : vector<8xf32> to vector<8x1xf32>
    %cst_8 = arith.constant 3.200000e+01 : f32
    %15 = vector.broadcast %cst_8 : f32 to vector<8x1xf32>
    %16 = arith.divf %14, %15 : vector<8x1xf32>
    %17 = vector.broadcast %9 : vector<8x1xf32> to vector<8x32xf32>
    %18 = arith.subf %1, %17 : vector<8x32xf32>
    %cst_9 = arith.constant 9.99999974E-6 : f32
    %19 = vector.broadcast %cst_9 : f32 to vector<8x1xf32>
    %20 = arith.addf %16, %19 : vector<8x1xf32>
    %21 = math.rsqrt %20 : vector<8x1xf32>
    %22 = vector.broadcast %21 : vector<8x1xf32> to vector<8x32xf32>
    %23 = arith.mulf %18, %22 : vector<8x32xf32>
    %24 = vector.shape_cast %3 : vector<32xf32> to vector<1x32xf32>
    %25 = vector.broadcast %24 : vector<1x32xf32> to vector<8x32xf32>
    %26 = arith.mulf %23, %25 : vector<8x32xf32>
    %27 = vector.shape_cast %5 : vector<32xf32> to vector<1x32xf32>
    %28 = vector.broadcast %27 : vector<1x32xf32> to vector<8x32xf32>
    %29 = arith.addf %26, %28 : vector<8x32xf32>
    %30 = arith.truncf %29 : vector<8x32xf32> to vector<8x32xbf16>
    %c0_10 = arith.constant 0 : index
    %c0_11 = arith.constant 0 : index
    %31 = vector.load %arg5[%c0_10, %c0_11] : memref<32x96xbf16, #tpu.memory_space<vmem>>, vector<32x96xbf16>
    %cst_12 = arith.constant dense<0.000000e+00> : vector<8x96xf32>
    %32 = tpu.matmul %30, %31, %cst_12 {dimension_numbers = #tpu.dot_dimension_numbers<[1], [0], [0], [1], [0, 0, 1, 1], [], []>} : vector<8x32xbf16>, vector<32x96xbf16>, vector<8x96xf32> -> vector<8x96xf32>
    %c0_13 = arith.constant 0 : index
    %c0_14 = arith.constant 0 : index
    %33 = vector.load %arg6[%c0_13, %c0_14] : memref<1x96xf32, #tpu.memory_space<vmem>>, vector<1x96xf32>
    %34 = vector.shape_cast %33 : vector<1x96xf32> to vector<96xf32>
    %35 = vector.shape_cast %34 : vector<96xf32> to vector<1x96xf32>
    %36 = vector.broadcast %35 : vector<1x96xf32> to vector<8x96xf32>
    %37 = arith.addf %32, %36 : vector<8x96xf32>
    %38 = arith.truncf %37 : vector<8x96xf32> to vector<8x96xbf16>
    %c0_15 = arith.constant 0 : index
    %c0_16 = arith.constant 0 : index
    %c0_17 = arith.constant 0 : index
    %39 = vector.load %arg7[%c0_15, %c0_16, %c0_17] : memref<1x8x96xbf16, #tpu.memory_space<vmem>>, vector<1x8x96xbf16>
    %40 = vector.shape_cast %39 : vector<1x8x96xbf16> to vector<8x96xbf16>
    %41 = vector.shape_cast %38 : vector<8x96xbf16> to vector<1x8x96xbf16>
    tpu.vector_store %arg7[%c0_15, %c0_16, %c0_17], %41 {strides = array<i32>} : memref<1x8x96xbf16, #tpu.memory_space<vmem>>, vector<1x8x96xbf16>,
    return
  }
  func.func @transform_0(%arg0: i32, %arg1: i32) -> (i32, i32, i32) {
    %c0_i32 = arith.constant 0 : i32
    %c0_i32_0 = arith.constant 0 : i32
    return %arg0, %arg1, %c0_i32 : i32, i32, i32
  }
  func.func @transform_1(%arg0: i32, %arg1: i32) -> (i32, i32) {
    %c0_i32 = arith.constant 0 : i32
    %c0_i32_0 = arith.constant 0 : i32
    %c0_i32_1 = arith.constant 0 : i32
    return %c0_i32, %c0_i32_0 : i32, i32
  }
  func.func @transform_2(%arg0: i32, %arg1: i32) -> (i32, i32) {
    %c0_i32 = arith.constant 0 : i32
    %c0_i32_0 = arith.constant 0 : i32
    %c0_i32_1 = arith.constant 0 : i32
    return %c0_i32, %c0_i32_0 : i32, i32
  }
  func.func @transform_3(%arg0: i32, %arg1: i32) -> (i32, i32) {
    %c0_i32 = arith.constant 0 : i32
    %c0_i32_0 = arith.constant 0 : i32
    %c0_i32_1 = arith.constant 0 : i32
    return %c0_i32, %c0_i32_0 : i32, i32
  }
  func.func @transform_4(%arg0: i32, %arg1: i32) -> (i32, i32) {
    %c0_i32 = arith.constant 0 : i32
    %c0_i32_0 = arith.constant 0 : i32
    %c0_i32_1 = arith.constant 0 : i32
    return %c0_i32, %c0_i32_0 : i32, i32
  }
  func.func @transform_5(%arg0: i32, %arg1: i32) -> (i32, i32, i32) {
    %c0_i32 = arith.constant 0 : i32
    %c0_i32_0 = arith.constant 0 : i32
    return %arg0, %arg1, %c0_i32 : i32, i32, i32
  }
}

</mosaic_0001>

<llo_original>
// kernel: tpu_custom_call.1
$region0: #{tpu_custom_call.1}
  #allocation0 [shape = 'u32[]', space=smem, size = 0x4, offset = 0x4, fixed_abs, tag = 'smem constant byte address 0x4 - core index']
  #allocation1 [shape = 'u32[144,128]{1,0:T(1,128)}', space=vmem, size = 0x12000, scoped, tag = 'internal scratch']
  %s0 = inlined_call_operand.hbm [shape: f32[2,8,32], index: 0, kind: input, shape index: {}]
  %s1 = inlined_call_operand.hbm [shape: f32[1,32], index: 1, kind: input, shape index: {}]
  %s2 = inlined_call_operand.hbm [shape: f32[1,32], index: 2, kind: input, shape index: {}]
  %s3 = inlined_call_operand.hbm [shape: bf16[32,96], index: 3, kind: input, shape index: {}]
  %s4 = inlined_call_operand.hbm [shape: f32[1,96], index: 4, kind: input, shape index: {}]
  %s5 = inlined_call_operand.hbm [shape: bf16[2,8,96], index: 5, kind: output, shape index: {}]
  %s6 = sld [smem:[#allocation0]]
  $region73: #{tpu_custom_call.1} parent=0
    _
  %s8 = ssub.s32 1, %s6
  %s9 = scalar_select 0, %s8, %s6
  $region1: #{tpu_custom_call.1} parent=0
    #allocation2 [shape = 'u8[8192]{0}', space=vmem, size = 0x2000, scoped, tag = 'input window, operand 0']
    #allocation3 [shape = 's32[2]{0}', space=sflag, size = 0x8, scoped, tag = 'scoped memory for tpu_custom_call.1']
    #allocation4 [shape = 's32[2]{0}', space=sflag, size = 0x8, scoped, tag = 'scoped memory for tpu_custom_call.1']
    #allocation5 [shape = 'u8[512]{0}', space=vmem, size = 0x400, scoped, tag = 'input window, operand 1, single buffered']
    #allocation6 [shape = 's32[1]{0}', space=sflag, size = 0x4, scoped, tag = 'scoped memory for tpu_custom_call.1']
    #allocation7 [shape = 'u8[512]{0}', space=vmem, size = 0x400, scoped, tag = 'input window, operand 2, single buffered']
    #allocation8 [shape = 'u8[8192]{0}', space=vmem, size = 0x2000, scoped, tag = 'input window, operand 3, single buffered']
    #allocation9 [shape = 's32[1]{0}', space=sflag, size = 0x4, scoped, tag = 'scoped memory for tpu_custom_call.1']
    #allocation10 [shape = 'u8[512]{0}', space=vmem, size = 0x400, scoped, tag = 'input window, operand 4, single buffered']
    #allocation11 [shape = 'u8[4096]{0}', space=vmem, size = 0x1000, scoped, tag = 'output window, operand 0']
    %10 = vsyncpa [#allocation3], 0
    %s11 = scalar_lea.sflag [#allocation3], 1
    %12 = vsyncpa %s11, 0
    %13 = vsyncpa [#allocation6], 0
    %14 = vsyncpa [#allocation9], 0
    %15 = vsyncpa [#allocation4], 0
    %s16 = scalar_lea.sflag [#allocation4], 1
    %17 = vsyncpa %s16, 0
    loop: start=0, step=1, limit=4
    $region2: #{tpu_custom_call.1} parent=1 // loop_pre_header
      _
    $region3: #{tpu_custom_call.1} parent=1 // loop_header
      %s19 = sphi 0, %s23
      %p20 = scmp.ge.s32.totalorder %s19, 4
      %s26 = sphi 0, %s38
      %s27 = sphi 0, %s34
      %s28 = sphi 0, %s26
      %s29 = sphi 0, %s27
      %s30 = sphi 0, %s28
      %s31 = sphi 0, %s29
      %s43 = sphi 0, %s45
      %s46 = sphi 0, %s43
      %s47 = sphi 0, %s46
      %s63 = sphi 0, %s47
      %s67 = sphi 0, %s67
      %s69 = sphi 0, %s67
      %s70 = sphi 0, %s69
      %s84 = sphi 0, %s70
      %s88 = sphi 0, %s88
      %s90 = sphi 0, %s88
      %s91 = sphi 0, %s90
      %s105 = sphi 0, %s91
      %s109 = sphi 0, %s109
      %s111 = sphi 0, %s109
      %s112 = sphi 0, %s111
      %s126 = sphi 0, %s112
      %s130 = sphi 0, %s130
      %s132 = sphi 0, %s130
      %s133 = sphi 0, %s132
      %s147 = sphi 0, %s133
      %s155 = sphi 0, %s157
      %s158 = sphi 0, %s155
      %s159 = sphi 0, %s158
      %s175 = sphi 0, %s159
    $region4: #{tpu_custom_call.1} parent=1 // loop_header_branch
      %22 = sbr.rel (%p20) target = $region8
    $region5: #{tpu_custom_call.1} parent=1 // loop_body
      %s24 = ssub.s32 %s19, 1
      %s25 = ssub.s32 %s19, 2
      %s32 = sadd.s32 1, %s27
      %p33 = scmp.ge.s32.totalorder %s32, 1
      %s34 = scalar_select %p33, 0, %s32
      %s35 = sadd.s32 1, %s26
      %s36 = scalar_select %p33, %s35, %s26
      %p37 = scmp.ge.s32.totalorder %s36, 2
      %s38 = scalar_select %p37, 0, %s36
      %s39 = ssub.s32 %s26, %s38
      %s40 = ssub.s32 %s27, %s34
      %s41 = sor.u32 %s39, %s40
      %p42 = scmp.eq.s32.totalorder %s41, 0
      %s44 = sadd.s32 %s43, 1
      %s45 = scalar_select %p42, %s43, %s44
      %p48 = pneg %p42
      %p49 = scmp.eq.s32.totalorder %s19, 1
      %p50 = por %p48, %p49
      %p51 = scmp.ne.s32.totalorder %s43, %s46
      %p52 = scmp.eq.s32.totalorder %s19, 0
      %p53 = por %p51, %p52
      %p54 = scmp.ne.s32.totalorder %s43, %s46
      %p55 = scmp.eq.s32.totalorder %s24, 1
      %p56 = por %p54, %p55
      %p57 = scmp.ne.s32.totalorder %s46, %s47
      %p58 = scmp.eq.s32.totalorder %s24, 0
      %p59 = por %p57, %p58
      %p60 = scmp.ne.s32.totalorder %s46, %s47
      %p61 = scmp.eq.s32.totalorder %s25, 1
      %p62 = por %p60, %p61
      %p64 = scmp.ne.s32.totalorder %s47, %s63
      %p65 = scmp.eq.s32.totalorder %s25, 0
      %p66 = por %p64, %p65
      %s68 = sadd.s32 %s67, 1
      %p71 = scmp.eq.s32.totalorder %s19, 1
      %p72 = scmp.ne.s32.totalorder %s67, %s69
      %p73 = scmp.eq.s32.totalorder %s19, 0
      %p74 = por %p72, %p73
      %p75 = scmp.ne.s32.totalorder %s67, %s69
      %p76 = scmp.eq.s32.totalorder %s24, 1
      %p77 = por %p75, %p76
      %p78 = scmp.ne.s32.totalorder %s69, %s70
      %p79 = scmp.eq.s32.totalorder %s24, 0
      %p80 = por %p78, %p79
      %p81 = scmp.ne.s32.totalorder %s69, %s70
      %p82 = scmp.eq.s32.totalorder %s25, 1
      %p83 = por %p81, %p82
      %p85 = scmp.ne.s32.totalorder %s70, %s84
      %p86 = scmp.eq.s32.totalorder %s25, 0
      %p87 = por %p85, %p86
      %s89 = sadd.s32 %s88, 1
      %p92 = scmp.eq.s32.totalorder %s19, 1
      %p93 = scmp.ne.s32.totalorder %s88, %s90
      %p94 = scmp.eq.s32.totalorder %s19, 0
      %p95 = por %p93, %p94
      %p96 = scmp.ne.s32.totalorder %s88, %s90
      %p97 = scmp.eq.s32.totalorder %s24, 1
      %p98 = por %p96, %p97
      %p99 = scmp.ne.s32.totalorder %s90, %s91
      %p100 = scmp.eq.s32.totalorder %s24, 0
      %p101 = por %p99, %p100
      %p102 = scmp.ne.s32.totalorder %s90, %s91
      %p103 = scmp.eq.s32.totalorder %s25, 1
      %p104 = por %p102, %p103
      %p106 = scmp.ne.s32.totalorder %s91, %s105
      %p107 = scmp.eq.s32.totalorder %s25, 0
      %p108 = por %p106, %p107
      %s110 = sadd.s32 %s109, 1
      %p113 = scmp.eq.s32.totalorder %s19, 1
      %p114 = scmp.ne.s32.totalorder %s109, %s111
      %p115 = scmp.eq.s32.totalorder %s19, 0
      %p116 = por %p114, %p115
      %p117 = scmp.ne.s32.totalorder %s109, %s111
      %p118 = scmp.eq.s32.totalorder %s24, 1
      %p119 = por %p117, %p118
      %p120 = scmp.ne.s32.totalorder %s111, %s112
      %p121 = scmp.eq.s32.totalorder %s24, 0
      %p122 = por %p120, %p121
      %p123 = scmp.ne.s32.totalorder %s111, %s112
      %p124 = scmp.eq.s32.totalorder %s25, 1
      %p125 = por %p123, %p124
      %p127 = scmp.ne.s32.totalorder %s112, %s126
      %p128 = scmp.eq.s32.totalorder %s25, 0
      %p129 = por %p127, %p128
      %s131 = sadd.s32 %s130, 1
      %p134 = scmp.eq.s32.totalorder %s19, 1
      %p135 = scmp.ne.s32.totalorder %s130, %s132
      %p136 = scmp.eq.s32.totalorder %s19, 0
      %p137 = por %p135, %p136
      %p138 = scmp.ne.s32.totalorder %s130, %s132
      %p139 = scmp.eq.s32.totalorder %s24, 1
      %p140 = por %p138, %p139
      %p141 = scmp.ne.s32.totalorder %s132, %s133
      %p142 = scmp.eq.s32.totalorder %s24, 0
      %p143 = por %p141, %p142
      %p144 = scmp.ne.s32.totalorder %s132, %s133
      %p145 = scmp.eq.s32.totalorder %s25, 1
      %p146 = por %p144, %p145
      %p148 = scmp.ne.s32.totalorder %s133, %s147
      %p149 = scmp.eq.s32.totalorder %s25, 0
      %p150 = por %p148, %p149
      %s151 = ssub.s32 %s26, %s38
      %s152 = ssub.s32 %s27, %s34
      %s153 = sor.u32 %s151, %s152
      %p154 = scmp.eq.s32.totalorder %s153, 0
      %s156 = sadd.s32 %s155, 1
      %s157 = scalar_select %p154, %s155, %s156
      %p160 = pneg %p154
      %p161 = scmp.eq.s32.totalorder %s19, 1
      %p162 = por %p160, %p161
      %p163 = scmp.ne.s32.totalorder %s155, %s158
      %p164 = scmp.eq.s32.totalorder %s19, 0
      %p165 = por %p163, %p164
      %p166 = scmp.ne.s32.totalorder %s155, %s158
      %p167 = scmp.eq.s32.totalorder %s24, 1
      %p168 = por %p166, %p167
      %p169 = scmp.ne.s32.totalorder %s158, %s159
      %p170 = scmp.eq.s32.totalorder %s24, 0
      %p171 = por %p169, %p170
      %p172 = scmp.ne.s32.totalorder %s158, %s159
      %p173 = scmp.eq.s32.totalorder %s25, 1
      %p174 = por %p172, %p173
      %p176 = scmp.ne.s32.totalorder %s159, %s175
      %p177 = scmp.eq.s32.totalorder %s25, 0
      %p178 = por %p176, %p177
      %p179 = scmp.le.s32.totalorder 1, %s19
      %p180 = scmp.lt.s32.totalorder %s19, 3
      %p181 = pnand %p179, %p180
      %p182 = pneg %p181
      // Predicated region
      $region9: #{tpu_custom_call.1} parent=5 // pred_check
        _
      $region10: #{tpu_custom_call.1} parent=5 // pred_check_branch
        %184 = sbr.rel (%p181) target = $region12
      $region11: #{tpu_custom_call.1} parent=5 // pred_region
        %s185 = ssub.s32 %s19, 1
        // Predicated region
        $region13: #{tpu_custom_call.1} parent=11 // pred_check
          %p186 = pneg %p80
        $region14: #{tpu_custom_call.1} parent=11 // pred_check_branch
          %188 = sbr.rel (%p186) target = $region16
        $region15: #{tpu_custom_call.1} parent=11 // pred_region
          %s190 = ssub.s32 16, 16
          %191 = vsyncadd [#allocation6], %s190
          %s193 = sshll.u32 [#allocation5], 4
          %s194 = int_to_ptr.vmem [resolvable:$true] %s193
          %196 = dma.hbm_to_vmem [thread:$0]  %s1, 16, %s194, [#allocation6]
        $region16: #{tpu_custom_call.1} parent=11 // pred_fallthru
          _
        // Predicated region
        $region17: #{tpu_custom_call.1} parent=11 // pred_check
          %p197 = pneg %p101
        $region18: #{tpu_custom_call.1} parent=11 // pred_check_branch
          %199 = sbr.rel (%p197) target = $region20
        $region19: #{tpu_custom_call.1} parent=11 // pred_region
          %s201 = ssub.s32 16, 16
          %202 = vsyncadd [#allocation6], %s201
          %s204 = sshll.u32 [#allocation7], 4
          %s205 = int_to_ptr.vmem [resolvable:$true] %s204
          %207 = dma.hbm_to_vmem [thread:$0]  %s2, 16, %s205, [#allocation6]
        $region20: #{tpu_custom_call.1} parent=11 // pred_fallthru
          _
        // Predicated region
        $region21: #{tpu_custom_call.1} parent=11 // pred_check
          %p208 = pneg %p122
        $region22: #{tpu_custom_call.1} parent=11 // pred_check_branch
          %210 = sbr.rel (%p208) target = $region24
        $region23: #{tpu_custom_call.1} parent=11 // pred_region
          %s212 = ssub.s32 256, 256
          %213 = vsyncadd [#allocation9], %s212
          %s214 = sshll.u32 [#allocation8], 4
          %s215 = int_to_ptr.vmem [resolvable:$true] %s214
          %220 = dma.hbm_to_vmem [thread:$0]  %s3, 256, %s215, [#allocation9], 64, 64, 4
        $region24: #{tpu_custom_call.1} parent=11 // pred_fallthru
          _
        // Predicated region
        $region25: #{tpu_custom_call.1} parent=11 // pred_check
          %p221 = pneg %p143
        $region26: #{tpu_custom_call.1} parent=11 // pred_check_branch
          %223 = sbr.rel (%p221) target = $region28
        $region27: #{tpu_custom_call.1} parent=11 // pred_region
          %s225 = ssub.s32 16, 16
          %226 = vsyncadd [#allocation9], %s225
          %s228 = sshll.u32 [#allocation10], 4
          %s229 = int_to_ptr.vmem [resolvable:$true] %s228
          %231 = dma.hbm_to_vmem [thread:$0]  %s4, 16, %s229, [#allocation9]
        $region28: #{tpu_custom_call.1} parent=11 // pred_fallthru
          _
      $region12: #{tpu_custom_call.1} parent=5 // pred_fallthru
        _
      %p232 = scmp.lt.s32.totalorder %s19, 2
      // Predicated region
      $region29: #{tpu_custom_call.1} parent=5 // pred_check
        %p233 = pneg %p232
      $region30: #{tpu_custom_call.1} parent=5 // pred_check_branch
        %235 = sbr.rel (%p233) target = $region32
      $region31: #{tpu_custom_call.1} parent=5 // pred_region
        // Predicated region
        $region33: #{tpu_custom_call.1} parent=31 // pred_check
          %p236 = pneg %p53
        $region34: #{tpu_custom_call.1} parent=31 // pred_check_branch
          %238 = sbr.rel (%p236) target = $region36
        $region35: #{tpu_custom_call.1} parent=31 // pred_region
          %s239 = sand.u32 %s43, 1
          %s240 = scalar_lea.sflag [#allocation3], %s239
          %s241 = sand.u32 %s43, 1
          %s242 = smul.addr %s241, 8
          %s243 = scalar_lea.vmem [#allocation2], %s242
          %s245 = ssub.s32 128, 128
          %246 = vsyncadd %s240, %s245
          %s247 = sadd.s32 %s27, %s26
          %s248 = smul.addr %s247, 128
          %s249 = scalar_lea.hbm %s0, %s248
          %s251 = sshll.u32 %s243, 4
          %s252 = int_to_ptr.vmem [resolvable:$true] %s251
          %254 = dma.hbm_to_vmem [thread:$0]  %s249, 128, %s252, %s240
        $region36: #{tpu_custom_call.1} parent=31 // pred_fallthru
          _
      $region32: #{tpu_custom_call.1} parent=5 // pred_fallthru
        _
      %p255 = scmp.le.s32.totalorder 1, %s19
      %p256 = scmp.lt.s32.totalorder %s19, 3
      %p257 = pnand %p255, %p256
      %p258 = pneg %p257
      // Predicated region
      $region37: #{tpu_custom_call.1} parent=5 // pred_check
        _
      $region38: #{tpu_custom_call.1} parent=5 // pred_check_branch
        %260 = sbr.rel (%p257) target = $region40
      $region39: #{tpu_custom_call.1} parent=5 // pred_region
        %s261 = ssub.s32 %s19, 1
        %s262 = sand.u32 %s46, 1
        %s263 = scalar_lea.sflag [#allocation3], %s262
        %s264 = sand.u32 %s46, 1
        %s265 = smul.addr %s264, 8
        %s266 = scalar_lea.vmem [#allocation2], %s265
        // Predicated region
        $region41: #{tpu_custom_call.1} parent=39 // pred_check
          %p267 = pneg %p59
        $region42: #{tpu_custom_call.1} parent=39 // pred_check_branch
          %269 = sbr.rel (%p267) target = $region44
        $region43: #{tpu_custom_call.1} parent=39 // pred_region
          %270 = dma.done %s263, 128
        $region44: #{tpu_custom_call.1} parent=39 // pred_fallthru
          _
        // Predicated region
        $region45: #{tpu_custom_call.1} parent=39 // pred_check
          %p271 = pneg %p80
        $region46: #{tpu_custom_call.1} parent=39 // pred_check_branch
          %273 = sbr.rel (%p271) target = $region48
        $region47: #{tpu_custom_call.1} parent=39 // pred_region
          %274 = dma.done [#allocation6], 16
        $region48: #{tpu_custom_call.1} parent=39 // pred_fallthru
          _
        // Predicated region
        $region49: #{tpu_custom_call.1} parent=39 // pred_check
          %p275 = pneg %p101
        $region50: #{tpu_custom_call.1} parent=39 // pred_check_branch
          %277 = sbr.rel (%p275) target = $region52
        $region51: #{tpu_custom_call.1} parent=39 // pred_region
          %278 = dma.done [#allocation6], 16
        $region52: #{tpu_custom_call.1} parent=39 // pred_fallthru
          _
        // Predicated region
        $region53: #{tpu_custom_call.1} parent=39 // pred_check
          %p279 = pneg %p122
        $region54: #{tpu_custom_call.1} parent=39 // pred_check_branch
          %281 = sbr.rel (%p279) target = $region56
        $region55: #{tpu_custom_call.1} parent=39 // pred_region
          %282 = dma.done [#allocation9], 256
        $region56: #{tpu_custom_call.1} parent=39 // pred_fallthru
          _
        // Predicated region
        $region57: #{tpu_custom_call.1} parent=39 // pred_check
          %p283 = pneg %p143
        $region58: #{tpu_custom_call.1} parent=39 // pred_check_branch
          %285 = sbr.rel (%p283) target = $region60
        $region59: #{tpu_custom_call.1} parent=39 // pred_region
          %286 = dma.done [#allocation9], 16
        $region60: #{tpu_custom_call.1} parent=39 // pred_fallthru
          _
        %s287 = sand.u32 %s46, 1
        %s288 = scalar_lea.sflag [#allocation3], %s287
        %s289 = sand.u32 %s46, 1
        %s290 = smul.addr %s289, 8
        %s291 = scalar_lea.vmem [#allocation2], %s290
        %p292 = pneg %p59
        %p293 = pneg %p56
        %p294 = pneg %p80
        %p295 = pneg %p77
        %p296 = pneg %p101
        %p297 = pneg %p98
        %p298 = pneg %p122
        %p299 = pneg %p119
        %p300 = pneg %p143
        %p301 = pneg %p140
        %p302 = pneg %p171
        %p303 = pneg %p168
        %s304 = sand.u32 %s158, 1
        %s305 = scalar_lea.sflag [#allocation4], %s304
        %s306 = sand.u32 %s158, 1
        %s307 = smul.addr %s306, 4
        %s308 = scalar_lea.vmem [#allocation11], %s307
        %v310 = vld [vmem:[%s266] sm:$0xff]
        %v311 = vld [vmem:[#allocation5] sm:$0x1]
        %v312 = vld [vmem:[#allocation7] sm:$0x1]
        %vm313 = vcmask 261120
        %v314 = vsel %vm313, %v310, 0.0
        %315 = vadd.xlane.f32.xlu0 %v314
        %v316 = vpop.xlane.xlu0 %315
        %v317 = vrcp.pop 32.0
        %v318 = vmul.f32 %v316, %v317
        %v319 = vsub.f32 %v310, %v318
        %v320 = vmul.f32 %v319, %v319
        %v321 = vsel %vm313, %v320, 0.0
        %322 = vadd.xlane.f32.xlu0 %v321
        %v323 = vpop.xlane.xlu0 %322
        %v324 = vmul.f32 %v323, %v317
        %v325 = vadd.f32 %v324, 1e-05
        %v326 = vrsqrt.pop %v325
        %v327 = vmul.f32 %v319, %v326
        %v329 = vlaneseq
        %v330 = vshrl.u32 %v329, 7
        %v331 = vsub.s32 0, %v330
        %v332 = vrot.slane %v311, %v331
        %v334 = vmul.f32 %v327, %v332
        %v336 = vlaneseq
        %v337 = vshrl.u32 %v336, 7
        %v338 = vsub.s32 0, %v337
        %v339 = vrot.slane %v312, %v338
        %v341 = vadd.f32 %v334, %v339
        %v342 = vpack.c.bf16 %v341, %v341
        %v343 = vld [vmem:[#allocation8] sm:$0xf]
        %v344 = vld [vmem:[#allocation8 + $0x4] sm:$0xf]
        %v345 = vld [vmem:[#allocation8 + $0x8] sm:$0xf]
        %v346 = vld [vmem:[#allocation8 + $0xc] sm:$0xf]
        %v347 = vld [vmem:[#allocation10] sm:$0x1]
        %v349 = vlaneseq
        %v350 = vshrl.u32 %v349, 7
        %v351 = vsub.s32 0, %v350
        %v352 = vrot.slane %v347, %v351
        %v358 = vunpack.c.l.b16 %v343
        %v359 = vunpack.c.l.b16 %v344
        %v360 = vunpack.c.l.b16 %v345
        %v361 = vunpack.c.l.b16 %v346
        %v362 = vpack.c.b16 %v359, %v358
        %v363 = vpack.c.b16 %v361, %v360
        %v367 = vsel %vm313, %v342, 0
        %369 = vmatprep.subr.bf16.mxu0 0
        %370 = vmatpush1.bf16.msra.mxu0 %v362
        %371 = vmatprep.subr.bf16.mxu0 0
        %372 = vmatpush1.bf16.msra.mxu0 %v363
        %373 = vmatprep.subr.bf16.mxu0 0
        %374 = vmatpush1.bf16.msra.mxu0 0
        %375 = vmatprep.subr.bf16.mxu0 0
        %376 = vmatpush1.bf16.msra.mxu0 0
        %377 = vmatprep.subr.bf16.mxu0 0
        %378 = vmatpush1.bf16.msra.mxu0 0
        %379 = vmatprep.subr.bf16.mxu0 0
        %380 = vmatpush1.bf16.msra.mxu0 0
        %381 = vmatprep.subr.bf16.mxu0 0
        %382 = vmatpush1.bf16.msra.mxu0 0
        %383 = vmatprep.subr.bf16.mxu0 0
        %384 = vmatpush1.bf16.msra.mxu0 0
        %385 = vmatprep.subr.bf16.mxu0 0
        %386 = vmatpush1.bf16.msra.mxu0 0
        %387 = vmatprep.subr.bf16.mxu0 0
        %388 = vmatpush1.bf16.msra.mxu0 0
        %389 = vmatprep.subr.bf16.mxu0 0
        %390 = vmatpush1.bf16.msra.mxu0 0
        %391 = vmatprep.subr.bf16.mxu0 0
        %392 = vmatpush1.bf16.msra.mxu0 0
        %393 = vmatprep.subr.bf16.mxu0 0
        %394 = vmatpush1.bf16.msra.mxu0 0
        %395 = vmatprep.subr.bf16.mxu0 0
        %396 = vmatpush1.bf16.msra.mxu0 0
        %397 = vmatprep.subr.bf16.mxu0 0
        %398 = vmatpush1.bf16.msra.mxu0 0
        %399 = vmatprep.subr.bf16.mxu0 0
        %400 = vmatpush1.bf16.msra.mxu0 0
        %401 = vmatprep.mubr.bf16.mxu0 0
        %402 = vmatmul.mubr.bf16.gmra.mrb[0].mxu0 %v367
        %v403 = vpop.f32.mrb[0].mxu0
        %v404 = vadd.f32 %v352, %v403
        %v405 = vpop.f32.mrb[0].mxu0
        %v406 = vpop.f32.mrb[0].mxu0
        %v407 = vpop.f32.mrb[0].mxu0
        %408 = vdwg.mxu0
        %v409 = vpack.c.bf16 %v404, %v404
        %vm410 = vcmask 781312
        %411 = vst.msk [vmem:[%s308] sm:$0xf] %vm410, %v409
        %s412 = sand.u32 %s158, 1
        %s413 = scalar_lea.sflag [#allocation4], %s412
        %s414 = sand.u32 %s158, 1
        %s415 = smul.addr %s414, 4
        %s416 = scalar_lea.vmem [#allocation11], %s415
        // Predicated region
        $region61: #{tpu_custom_call.1} parent=39 // pred_check
          %p417 = pneg %p168
        $region62: #{tpu_custom_call.1} parent=39 // pred_check_branch
          %419 = sbr.rel (%p417) target = $region64
        $region63: #{tpu_custom_call.1} parent=39 // pred_region
          %s421 = ssub.s32 64, 64
          %422 = vsyncadd %s413, %s421
          %s423 = sadd.s32 %s29, %s28
          %s424 = smul.addr %s423, 64
          %s425 = scalar_lea.hbm %s5, %s424
          %s427 = sshll.u32 %s416, 4
          %s428 = int_to_ptr.vmem [resolvable:$true] %s427
          %430 = dma.vmem_to_hbm [thread:$0]  %s428, 64, %s425, %s413
        $region64: #{tpu_custom_call.1} parent=39 // pred_fallthru
          _
      $region40: #{tpu_custom_call.1} parent=5 // pred_fallthru
        _
      %p431 = scmp.le.s32.totalorder 2, %s19
      // Predicated region
      $region65: #{tpu_custom_call.1} parent=5 // pred_check
        %p432 = pneg %p431
      $region66: #{tpu_custom_call.1} parent=5 // pred_check_branch
        %434 = sbr.rel (%p432) target = $region68
      $region67: #{tpu_custom_call.1} parent=5 // pred_region
        %s435 = ssub.s32 %s19, 2
        // Predicated region
        $region69: #{tpu_custom_call.1} parent=67 // pred_check
          %p436 = pneg %p174
        $region70: #{tpu_custom_call.1} parent=67 // pred_check_branch
          %438 = sbr.rel (%p436) target = $region72
        $region71: #{tpu_custom_call.1} parent=67 // pred_region
          %s439 = sand.u32 %s159, 1
          %s440 = scalar_lea.sflag [#allocation4], %s439
          %s441 = sand.u32 %s159, 1
          %s442 = smul.addr %s441, 4
          %s443 = scalar_lea.vmem [#allocation11], %s442
          %444 = dma.done %s440, 64
        $region72: #{tpu_custom_call.1} parent=67 // pred_fallthru
          _
      $region68: #{tpu_custom_call.1} parent=5 // pred_fallthru
        _
    $region6: #{tpu_custom_call.1} parent=1 // loop_footer
      %s23 = sadd.s32 1, %s19
    $region7: #{tpu_custom_call.1} parent=1 // loop_footer_branch
      %18 = sbr.rel target = $region3
    $region8: #{tpu_custom_call.1} parent=1 // loop_exit
      _
    %445 = vsyncpa [#allocation3], 1
    %s446 = scalar_lea.sflag [#allocation3], 1
    %447 = vsyncpa %s446, 1
    %448 = vsyncpa [#allocation6], 1
    %449 = vsyncpa [#allocation9], 1
    %450 = vsyncpa [#allocation4], 1
    %s451 = scalar_lea.sflag [#allocation4], 1
    %452 = vsyncpa %s451, 1

</llo_original>
